<compile_context>
chip_gen: v5e
topology: v5e:2x2
jax: 0.10.0
libtpu: 0.0.40
codegen_flags: <defaults>
</compile_context>

<pallas_src>
import math

import jax
import jax.numpy as jnp
from jax.experimental import pallas as pl
from jax.experimental.pallas import tpu as pltpu

_LANES = 128
_BYTE_BUDGET = 2 << 20      # ~2 MiB per operand block (x2 double buffering)
_VMEM_LIMIT = 32 << 20      # raise v5e's 16 MiB scoped default; safe on v6e/v7x


def _add_kernel(x_ref, y_ref, o_ref):
    # One load per operand, one store; in-kernel broadcast over size-1 dims.
    o_ref[...] = x_ref[...] + y_ref[...]


def _sublane(dtype) -> int:
    # Packed-sublane multiple: 8 for 4-byte, 16 for 2-byte, 32 for 1-byte.
    item = jnp.dtype(dtype).itemsize
    return max(8, 32 // max(1, item))


def _pick_blocks(rows, cols, dtype, allow_split=True):
    """Pick (block_rows, block_cols) from a byte budget.

    block_cols is either the full `cols` (always legal) or a multiple of 128;
    block_rows is either the full `rows` or a multiple of the packed sublane
    count — so the (8, 128) BlockSpec constraint is always satisfied, and
    ragged boundary blocks are handled by pl.cdiv grids.
    """
    item = jnp.dtype(dtype).itemsize
    sub = _sublane(dtype)

    max_cols = max(_LANES, (_BYTE_BUDGET // (item * sub)) // _LANES * _LANES)
    bc = cols if cols <= max_cols else max_cols

    br = _BYTE_BUDGET // max(1, bc * item)
    br = max(sub, (br // sub) * sub)
    if br >= rows:
        if allow_split and rows >= 2 * sub and rows * cols * item > (1 << 20):
            # Split into ~2 row blocks so the "parallel" axis can use both
            # TensorCores on v7x (irrelevant but harmless on v5e/v6e).
            br = (((rows + 1) // 2 + sub - 1) // sub) * sub
        else:
            br = rows
    return br, bc


def _add_same_shape(x, y):
    """x.shape == y.shape: run on a free 2-D view of the original buffers."""
    shape = x.shape
    n = math.prod(shape) if shape else 1
    dtype = x.dtype

    if n >= _LANES and n % _LANES == 0:
        # Lane-dense flat view (bitcast reshape, no copy): unmasked 128-lane
        # loads/stores regardless of the original trailing-dim size.
        rows, cols = n // _LANES, _LANES
    else:
        cols = shape[-1] if len(shape) >= 1 else 1
        rows = n // cols

    x2 = x.reshape(rows, cols)
    y2 = y.reshape(rows, cols)
    br, bc = _pick_blocks(rows, cols, dtype)
    grid = (pl.cdiv(rows, br), pl.cdiv(cols, bc))

    out = pl.pallas_call(
        _add_kernel,
        out_shape=jax.ShapeDtypeStruct((rows, cols), dtype),
        grid_spec=pltpu.PrefetchScalarGridSpec(
            num_scalar_prefetch=0,
            grid=grid,
            in_specs=[
                pl.BlockSpec((br, bc), lambda i, j: (i, j)),
                pl.BlockSpec((br, bc), lambda i, j: (i, j)),
            ],
            out_specs=pl.BlockSpec((br, bc), lambda i, j: (i, j)),
        ),
        compiler_params=pltpu.CompilerParams(
            dimension_semantics=("parallel",) * len(grid),
            vmem_limit_bytes=_VMEM_LIMIT,
        ),
    )(x2, y2)
    return out.reshape(shape)


def _add_broadcast(x, y, out_shape, out_dtype):
    """Broadcasting add: broadcast axes are expressed via BlockSpec/index_map,
    so the small operand is never materialized at full size in HBM."""
    ndim = max(len(out_shape), 2)
    oshape = (1,) * (ndim - len(out_shape)) + tuple(out_shape)
    xs = (1,) * (ndim - x.ndim) + tuple(x.shape)
    ys = (1,) * (ndim - y.ndim) + tuple(y.shape)
    x = x.reshape(xs)  # rank padding with leading 1s is free
    y = y.reshape(ys)

    lead = oshape[:-2]
    R, C = oshape[-2], oshape[-1]
    # Don't bother splitting rows for megacore if leading grid axes already
    # provide parallel steps.
    br, bc = _pick_blocks(R, C, out_dtype, allow_split=(math.prod(lead) <= 1))
    grid = tuple(lead) + (pl.cdiv(R, br), pl.cdiv(C, bc))

    def make_in_spec(ishape):
        bshape = tuple(1 for _ in lead) + (
            br if ishape[-2] != 1 else 1,
            bc if ishape[-1] != 1 else 1,
        )
        mask = tuple(s != 1 for s in ishape)

        def imap(*idxs):
            # Broadcast dims always read block 0; others follow the grid.
            return tuple(i if m else 0 for i, m in zip(idxs, mask))

        return pl.BlockSpec(bshape, imap)

    out_bshape = tuple(1 for _ in lead) + (br, bc)
    out = pl.pallas_call(
        _add_kernel,
        out_shape=jax.ShapeDtypeStruct(oshape, out_dtype),
        grid_spec=pltpu.PrefetchScalarGridSpec(
            num_scalar_prefetch=0,
            grid=grid,
            in_specs=[make_in_spec(xs), make_in_spec(ys)],
            out_specs=pl.BlockSpec(out_bshape, lambda *idxs: idxs),
        ),
        compiler_params=pltpu.CompilerParams(
            dimension_semantics=("parallel",) * len(grid),
            vmem_limit_bytes=_VMEM_LIMIT,
        ),
    )(x, y)
    return out.reshape(out_shape)


def add_forward(x, y):
    """Element-wise x + y (with broadcasting), computed with a Pallas kernel."""
    x = jnp.asarray(x)
    y = jnp.asarray(y)
    out_shape = jnp.broadcast_shapes(x.shape, y.shape)
    # TODO(synk): jnp.result_type may differ from torch's promotion for mixed
    # weak-typed scalar inputs; exact torch.add parity not required here.
    out_dtype = jnp.result_type(x, y)

    n = math.prod(out_shape) if out_shape else 1
    if n == 0:
        return jnp.zeros(out_shape, out_dtype)

    x = x.astype(out_dtype)
    y = y.astype(out_dtype)

    if x.shape == y.shape:
        return _add_same_shape(x, y)
    return _add_broadcast(x, y, out_shape, out_dtype)


if __name__ == "__main__":
    key = jax.random.PRNGKey(0)
    k1, k2, k3, k4 = jax.random.split(key, 4)

    B, C, H, W = 2, 4, 16, 16
    x = jax.random.normal(k1, (B, C, H, W), dtype=jnp.float32)
    y = jax.random.normal(k2, (B, C, H, W), dtype=jnp.float32)

    # Same-shape path (lane-dense flat view, no wrapper copies).
    out = jax.block_until_ready(add_forward(x, y))
    ref = x + y
    assert out.shape == ref.shape and out.dtype == ref.dtype
    assert jnp.allclose(out, ref, atol=1e-6, rtol=1e-6)

    # Broadcasting path (broadcast handled via BlockSpec index_map).
    y_bcast = jax.random.normal(k3, (1, C, 1, W), dtype=jnp.float32)
    out_b = jax.block_until_ready(add_forward(x, y_bcast))
    assert jnp.allclose(out_b, x + y_bcast, atol=1e-6, rtol=1e-6)

    # Ragged / non-128-multiple shape (no padding copies, cdiv grid clips).
    x_odd = jax.random.normal(k4, (3, 5, 19), dtype=jnp.float32)
    out_o = jax.block_until_ready(add_forward(x_odd, 2.0))
    assert jnp.allclose(out_o, x_odd + 2.0, atol=1e-6, rtol=1e-6)

    print("KERNEL_OK")
</pallas_src>

<mosaic_0001>
module attributes {stable_mosaic.version = 11 : i64} {
  func.func @_add_kernel(%arg0: i32, %arg1: i32, %arg2: memref<16x128xf32, #tpu.memory_space<vmem>>, %arg3: memref<16x128xf32, #tpu.memory_space<vmem>>, %arg4: memref<16x128xf32, #tpu.memory_space<vmem>>) attributes {dimension_semantics = [#tpu.dimension_semantics<parallel>, #tpu.dimension_semantics<parallel>], iteration_bounds = array<i64: 1, 1>, scalar_prefetch = 0 : i64, scratch_operands = 0 : i64, tpu.core_type = #tpu.core_type<tc>, window_params = [{transform_indices = @transform_0, window_bounds = array<i64: 16, 128>}, {transform_indices = @transform_1, window_bounds = array<i64: 16, 128>}, {transform_indices = @transform_2, window_bounds = array<i64: 16, 128>}]} {
    %c0 = arith.constant 0 : index
    %c0_0 = arith.constant 0 : index
    %0 = vector.load %arg2[%c0, %c0_0] : memref<16x128xf32, #tpu.memory_space<vmem>>, vector<16x128xf32>
    %c0_1 = arith.constant 0 : index
    %c0_2 = arith.constant 0 : index
    %1 = vector.load %arg3[%c0_1, %c0_2] : memref<16x128xf32, #tpu.memory_space<vmem>>, vector<16x128xf32>
    %2 = arith.addf %0, %1 : vector<16x128xf32>
    %c0_3 = arith.constant 0 : index
    %c0_4 = arith.constant 0 : index
    %3 = vector.load %arg4[%c0_3, %c0_4] : memref<16x128xf32, #tpu.memory_space<vmem>>, vector<16x128xf32>
    tpu.vector_store %arg4[%c0_3, %c0_4], %2 {strides = array<i32>} : memref<16x128xf32, #tpu.memory_space<vmem>>, vector<16x128xf32>,
    return
  }
  func.func @transform_0(%arg0: i32, %arg1: i32) -> (i32, i32) {
    %c0_i32 = arith.constant 0 : i32
    return %arg0, %arg1 : i32, i32
  }
  func.func @transform_1(%arg0: i32, %arg1: i32) -> (i32, i32) {
    %c0_i32 = arith.constant 0 : i32
    return %arg0, %arg1 : i32, i32
  }
  func.func @transform_2(%arg0: i32, %arg1: i32) -> (i32, i32) {
    %c0_i32 = arith.constant 0 : i32
    return %arg0, %arg1 : i32, i32
  }
}

</mosaic_0001>

<llo_original>
// kernel: tpu_custom_call.1
$region0: #{tpu_custom_call.1}
  #allocation0 [shape = 'u32[]', space=smem, size = 0x4, offset = 0x4, fixed_abs, tag = 'smem constant byte address 0x4 - core index']
  #allocation1 [shape = 'u32[72,128]{1,0:T(1,128)}', space=vmem, size = 0x9000, scoped, tag = 'internal scratch']
  %s0 = inlined_call_operand.hbm [shape: f32[16,128], index: 0, kind: input, shape index: {}]
  %s1 = inlined_call_operand.hbm [shape: f32[16,128], index: 1, kind: input, shape index: {}]
  %s2 = inlined_call_operand.hbm [shape: f32[16,128], index: 2, kind: output, shape index: {}]
  %s3 = sld [smem:[#allocation0]]
  $region26: #{tpu_custom_call.1} parent=0
    _
  %s5 = ssub.s32 1, %s3
  %s6 = scalar_select 0, %s5, %s3
  $region1: #{tpu_custom_call.1} parent=0
    #allocation2 [shape = 'u8[8192]{0}', space=vmem, size = 0x2000, scoped, tag = 'input window, operand 0, single buffered']
    #allocation3 [shape = 's32[1]{0}', space=sflag, size = 0x4, scoped, tag = 'scoped memory for tpu_custom_call.1']
    #allocation4 [shape = 's32[1]{0}', space=sflag, size = 0x4, scoped, tag = 'scoped memory for tpu_custom_call.1']
    #allocation5 [shape = 'u8[8192]{0}', space=vmem, size = 0x2000, scoped, tag = 'input window, operand 1, single buffered']
    #allocation6 [shape = 's32[1]{0}', space=sflag, size = 0x4, scoped, tag = 'scoped memory for tpu_custom_call.1']
    #allocation7 [shape = 'u8[8192]{0}', space=vmem, size = 0x2000, scoped, tag = 'output window, operand 0, single buffered']
    %7 = vsyncpa [#allocation3], 0
    %8 = vsyncpa [#allocation6], 0
    %9 = vsyncpa [#allocation4], 0
    // Predicated region
    $region2: #{tpu_custom_call.1} parent=1 // pred_check
      _
    $region3: #{tpu_custom_call.1} parent=1 // pred_check_branch
      %11 = sbr.rel (0) target = $region5
    $region4: #{tpu_custom_call.1} parent=1 // pred_region
      %13 = vsyncadd [#allocation3], 0
      %s14 = sshll.u32 %s0, 4
      %s15 = int_to_ptr.hbm [resolvable:$true] %s14
      %s16 = sshll.u32 [#allocation2], 4
      %s17 = int_to_ptr.vmem [resolvable:$true] %s16
      %22 = dma.hbm_to_vmem [thread:$0]  %s15, 256, %s17, [#allocation3], 128, 128, 8
    $region5: #{tpu_custom_call.1} parent=1 // pred_fallthru
      _
    // Predicated region
    $region6: #{tpu_custom_call.1} parent=1 // pred_check
      _
    $region7: #{tpu_custom_call.1} parent=1 // pred_check_branch
      %24 = sbr.rel (0) target = $region9
    $region8: #{tpu_custom_call.1} parent=1 // pred_region
      %26 = vsyncadd [#allocation6], 0
      %s27 = sshll.u32 %s1, 4
      %s28 = int_to_ptr.hbm [resolvable:$true] %s27
      %s29 = sshll.u32 [#allocation5], 4
      %s30 = int_to_ptr.vmem [resolvable:$true] %s29
      %35 = dma.hbm_to_vmem [thread:$0]  %s28, 256, %s30, [#allocation6], 128, 128, 8
    $region9: #{tpu_custom_call.1} parent=1 // pred_fallthru
      _
    // Predicated region
    $region10: #{tpu_custom_call.1} parent=1 // pred_check
      _
    $region11: #{tpu_custom_call.1} parent=1 // pred_check_branch
      %37 = sbr.rel (0) target = $region13
    $region12: #{tpu_custom_call.1} parent=1 // pred_region
      %39 = dma.done [#allocation3], 256
    $region13: #{tpu_custom_call.1} parent=1 // pred_fallthru
      _
    // Predicated region
    $region14: #{tpu_custom_call.1} parent=1 // pred_check
      _
    $region15: #{tpu_custom_call.1} parent=1 // pred_check_branch
      %41 = sbr.rel (0) target = $region17
    $region16: #{tpu_custom_call.1} parent=1 // pred_region
      %43 = dma.done [#allocation6], 256
    $region17: #{tpu_custom_call.1} parent=1 // pred_fallthru
      _
    %v44 = vld [vmem:[#allocation2] sm:$0xff]
    %v45 = vld [vmem:[#allocation2 + $0x8] sm:$0xff]
    %v46 = vld [vmem:[#allocation5] sm:$0xff]
    %v47 = vld [vmem:[#allocation5 + $0x8] sm:$0xff]
    %v48 = vadd.f32 %v44, %v46
    %v49 = vadd.f32 %v45, %v47
    %50 = vst [vmem:[#allocation7] sm:$0xff] %v48
    %51 = vst [vmem:[#allocation7 + $0x8] sm:$0xff] %v49
    // Predicated region
    $region18: #{tpu_custom_call.1} parent=1 // pred_check
      _
    $region19: #{tpu_custom_call.1} parent=1 // pred_check_branch
      %53 = sbr.rel (0) target = $region21
    $region20: #{tpu_custom_call.1} parent=1 // pred_region
      %55 = vsyncadd [#allocation4], 0
      %s56 = sshll.u32 [#allocation7], 4
      %s57 = int_to_ptr.vmem [resolvable:$true] %s56
      %s58 = sshll.u32 %s2, 4
      %s59 = int_to_ptr.hbm [resolvable:$true] %s58
      %64 = dma.vmem_to_hbm [thread:$0]  %s57, 256, %s59, [#allocation4], 128, 128, 8
    $region21: #{tpu_custom_call.1} parent=1 // pred_fallthru
      _
    // Predicated region
    $region22: #{tpu_custom_call.1} parent=1 // pred_check
      _
    $region23: #{tpu_custom_call.1} parent=1 // pred_check_branch
      %66 = sbr.rel (0) target = $region25
    $region24: #{tpu_custom_call.1} parent=1 // pred_region
      %68 = dma.done [#allocation4], 256
    $region25: #{tpu_custom_call.1} parent=1 // pred_fallthru
      _
    %69 = vsyncpa [#allocation3], 1
    %70 = vsyncpa [#allocation6], 1
    %71 = vsyncpa [#allocation4], 1

</llo_original>
